<compile_context>
chip_gen: v7x
topology: tpu7x:2x2x1
jax: 0.10.0
libtpu: 0.0.40
codegen_flags: <defaults>
</compile_context>

<pallas_src>
import functools

import jax
import jax.numpy as jnp
from jax.experimental import pallas as pl
from jax.experimental.pallas import tpu as pltpu

BN_EPS = 1e-5      # nn.BatchNorm2d default eps
L2_EPS = 1e-12     # F.normalize default eps


def _vmem_capacity_bytes():
    try:
        return int(pltpu.get_tpu_info().vmem_capacity_bytes)
    except Exception:
        return 64 << 20            # conservative default (v7x per-core VMEM)


def _conv1_spill_threshold():
    """dim_in above which spilling h to HBM beats recomputing conv1 in pass 2
    (~ MXU rate / HBM bandwidth, per generation)."""
    try:
        kind = jax.devices()[0].device_kind.lower()
    except Exception:
        return 512
    if "v5" in kind:
        return 240
    if "v6" in kind:
        return 680
    if "v7" in kind or "7x" in kind:
        return 310
    return 512


def _choose_tiling(N, C, Cproj, HW, x_bytes, cd_bytes, o_bytes, budget,
                   tile_hw_cap=4096, max_nb=8):
    """Pick (batch block nb, hw tile T) from a per-step VMEM budget."""
    per_col = (2 * C * x_bytes            # x block (double-buffered)
               + 2 * Cproj * o_bytes      # output block (double-buffered)
               + 2 * C * cd_bytes         # spilled h block (worst case)
               + (2 * C + Cproj) * 4      # f32 temporaries (h, BN/ReLU h, y)
               + C * cd_bytes)            # compute-dtype cast of x / h
    fixed = (C * C + Cproj * C) * cd_bytes + (6 * C + 2 * Cproj) * 4 + (1 << 20)
    avail = max(budget - fixed, 128 * per_col)
    max_cols = max(128, (avail // per_col) // 128 * 128)
    tile_target = int(min(tile_hw_cap, max_cols))

    if HW <= tile_target:
        # One tile covers all pixels; pack several images per grid step so the
        # per-step overhead and weight re-touch are amortized.
        T, num_tiles, mask_cols = HW, 1, False
        nb = 1
        for d in range(1, min(N, max_nb) + 1):
            if N % d == 0 and d * HW <= tile_target:
                nb = d
    else:
        T = tile_target
        num_tiles = -(-HW // T)
        mask_cols = (HW % T) != 0
        nb = 1
    return nb, T, num_tiles, mask_cols


def _stats_kernel(x_ref, w1_ref, b1_ref, *out_refs, nb, hw, tile, mask_cols,
                  spill_h, compute_dtype):
    """Per-channel sum / sum-of-squares of h = W1 @ x + b1 for one (nb, C, T)
    block; optionally spills h (compute dtype) for reuse in pass 2."""
    if spill_h:
        sum_ref, ssq_ref, h_ref = out_refs
    else:
        sum_ref, ssq_ref = out_refs
    j = pl.program_id(1)

    @pl.when(j == 0)
    def _init():
        sum_ref[...] = jnp.zeros_like(sum_ref)
        ssq_ref[...] = jnp.zeros_like(ssq_ref)

    w1 = w1_ref[...]
    b1 = b1_ref[...]                                       # (C, 1) f32

    hs = []
    for i in range(nb):                                    # static, small unroll
        x = x_ref[i].astype(compute_dtype)                 # (C, T)
        h = jnp.dot(w1, x, preferred_element_type=jnp.float32) + b1
        if spill_h:
            h_ref[i] = h.astype(h_ref.dtype)
        hs.append(h)

    def _accumulate(mask):
        s = q = None
        for h in hs:
            hm = jnp.where(mask, h, 0.0) if mask is not None else h
            si = jnp.sum(hm, axis=1, keepdims=True)        # (C, 1)
            qi = jnp.sum(hm * hm, axis=1, keepdims=True)
            s = si if s is None else s + si
            q = qi if q is None else q + qi
        sum_ref[...] += s[None]                            # (1, C, 1)
        ssq_ref[...] += q[None]

    if mask_cols:
        # Only the ragged last hw tile masks the padded columns (cheap elsewhere).
        last = pl.num_programs(1) - 1
        col = j * tile + jax.lax.broadcasted_iota(jnp.int32, (1, tile), 1)

        @pl.when(j == last)
        def _edge():
            _accumulate(col < hw)

        @pl.when(j != last)
        def _interior():
            _accumulate(None)
    else:
        _accumulate(None)


def _apply_kernel(*refs, nb, recompute, compute_dtype):
    """(conv1 or spilled h) -> BN scale/shift -> ReLU -> conv2 -> L2 normalize."""
    if recompute:
        x_ref, w1_ref, b1_ref, scale_ref, shift_ref, w2_ref, b2_ref, o_ref = refs
        w1 = w1_ref[...]
        b1 = b1_ref[...]
    else:
        h_ref, scale_ref, shift_ref, w2_ref, b2_ref, o_ref = refs

    scale = scale_ref[...]                                 # (C, 1) f32
    shift = shift_ref[...]
    w2 = w2_ref[...]
    b2 = b2_ref[...]                                       # (Cproj, 1) f32

    for i in range(nb):                                    # static, small unroll
        if recompute:
            x = x_ref[i].astype(compute_dtype)             # (C, T)
            h = jnp.dot(w1, x, preferred_element_type=jnp.float32) + b1
        else:
            h = h_ref[i].astype(jnp.float32)               # spilled conv1 output
        h = jnp.maximum(h * scale + shift, 0.0)            # BN + ReLU, f32
        y = jnp.dot(w2, h.astype(compute_dtype),
                    preferred_element_type=jnp.float32) + b2   # (Cproj, T) f32
        # F.normalize(y, p=2, dim=channel) == y * rsqrt(max(sum(y^2), eps^2))
        sumsq = jnp.sum(y * y, axis=0, keepdims=True)      # (1, T)
        o_ref[i] = (y * jax.lax.rsqrt(jnp.maximum(sumsq, L2_EPS * L2_EPS))
                    ).astype(o_ref.dtype)


def projection_head_forward(x_nchw, w1, b1, gamma, beta, w2, b2, *,
                            compute_dtype=jnp.bfloat16, out_dtype=None,
                            spill_h=None, tile_hw_cap=4096):
    """x_nchw: (N, C, H, W).  PyTorch Conv2d convention with 1x1 kernels
    squeezed: w1 (C, C), b1 (C,), w2 (proj_dim, C), b2 (proj_dim,), BatchNorm2d
    weight/bias gamma/beta (C,).  Returns (N, proj_dim, H, W) in out_dtype
    (defaults to x's dtype)."""
    N, C, H, W = x_nchw.shape
    Cproj = w2.shape[0]
    assert w1.shape == (C, C) and w2.shape == (Cproj, C)
    HW = H * W
    out_dtype = x_nchw.dtype if out_dtype is None else out_dtype

    if spill_h is None:
        spill_h = C >= _conv1_spill_threshold()

    # (N, C, H, W) -> (N, C, H*W): metadata-only reshape, original dtype.
    x3d = x_nchw.reshape(N, C, HW)

    # Tiny weight / per-channel vector prep (negligible HBM traffic).
    w1c = w1.astype(compute_dtype)
    w2c = w2.astype(compute_dtype)
    b1c = b1.reshape(C, 1).astype(jnp.float32)
    b2c = b2.reshape(Cproj, 1).astype(jnp.float32)

    vmem_budget = max(16 << 20, min(int(_vmem_capacity_bytes() * 0.75), 96 << 20))
    nb, T, num_tiles, mask_cols = _choose_tiling(
        N, C, Cproj, HW,
        x_bytes=x3d.dtype.itemsize,
        cd_bytes=jnp.dtype(compute_dtype).itemsize,
        o_bytes=jnp.dtype(out_dtype).itemsize,
        budget=vmem_budget, tile_hw_cap=tile_hw_cap)
    n_grid = N // nb
    grid = (n_grid, num_tiles)

    def _run(single_buffer_consts):
        pmode = pl.Buffered(1) if single_buffer_consts else None

        def const(shape):
            # Constant-index-map inputs (weights / per-channel vectors): single
            # buffer them — double-buffering them only burns VMEM.
            zeros = (0,) * len(shape)
            if pmode is None:
                return pl.BlockSpec(shape, lambda n, j: zeros)
            return pl.BlockSpec(shape, lambda n, j: zeros, pipeline_mode=pmode)

        x_spec = pl.BlockSpec((nb, C, T), lambda n, j: (n, 0, j))
        part_spec = pl.BlockSpec((1, C, 1), lambda n, j: (n, 0, 0))

        # ---- pass 1: per-channel sum / sum-of-squares partials ---------------
        stats_out_shape = [jax.ShapeDtypeStruct((n_grid, C, 1), jnp.float32),
                           jax.ShapeDtypeStruct((n_grid, C, 1), jnp.float32)]
        stats_out_specs = [part_spec, part_spec]
        if spill_h:
            stats_out_shape.append(jax.ShapeDtypeStruct((N, C, HW), compute_dtype))
            stats_out_specs.append(pl.BlockSpec((nb, C, T), lambda n, j: (n, 0, j)))

        stats = pl.pallas_call(
            functools.partial(_stats_kernel, nb=nb, hw=HW, tile=T,
                              mask_cols=mask_cols, spill_h=spill_h,
                              compute_dtype=compute_dtype),
            out_shape=tuple(stats_out_shape),
            grid=grid,
            in_specs=[x_spec, const((C, C)), const((C, 1))],
            out_specs=tuple(stats_out_specs),
            compiler_params=pltpu.CompilerParams(
                dimension_semantics=("parallel", "arbitrary"),
                vmem_limit_bytes=vmem_budget),
        )(x3d, w1c, b1c)
        sum_p, ssq_p = stats[0], stats[1]
        h_spill = stats[2] if spill_h else None

        # ---- BN finalize on tiny (C, 1) partials (wrapper-side, O(C) work) ----
        inv_count = 1.0 / float(N * HW)
        mean = jnp.sum(sum_p, axis=0) * inv_count                       # (C, 1)
        var = jnp.maximum(jnp.sum(ssq_p, axis=0) * inv_count - mean * mean, 0.0)
        bn_scale = gamma.reshape(C, 1).astype(jnp.float32) * jax.lax.rsqrt(var + BN_EPS)
        bn_shift = beta.reshape(C, 1).astype(jnp.float32) - mean * bn_scale

        # ---- pass 2: BN + ReLU + conv2 + L2 normalize ------------------------
        if spill_h:
            in_specs = [pl.BlockSpec((nb, C, T), lambda n, j: (n, 0, j)),
                        const((C, 1)), const((C, 1)),
                        const((Cproj, C)), const((Cproj, 1))]
            args = (h_spill, bn_scale, bn_shift, w2c, b2c)
        else:
            in_specs = [x_spec,
                        const((C, C)), const((C, 1)),
                        const((C, 1)), const((C, 1)),
                        const((Cproj, C)), const((Cproj, 1))]
            args = (x3d, w1c, b1c, bn_scale, bn_shift, w2c, b2c)

        out = pl.pallas_call(
            functools.partial(_apply_kernel, nb=nb, recompute=not spill_h,
                              compute_dtype=compute_dtype),
            out_shape=jax.ShapeDtypeStruct((N, Cproj, HW), out_dtype),
            grid=grid,
            in_specs=in_specs,
            out_specs=pl.BlockSpec((nb, Cproj, T), lambda n, j: (n, 0, j)),
            compiler_params=pltpu.CompilerParams(
                dimension_semantics=("parallel", "parallel"),
                vmem_limit_bytes=vmem_budget),
        )(*args)
        return out.reshape(N, Cproj, H, W)

    try:
        return _run(single_buffer_consts=True)
    except Exception:
        # pl.Buffered(1) (single-buffered constants) unsupported on this
        # jax/libtpu build; fall back to default double buffering.
        return _run(single_buffer_consts=False)


def _reference_forward(x_nchw, w1, b1, gamma, beta, w2, b2):
    """Pure-JAX reference of the PyTorch forward (training-mode BatchNorm)."""
    N, C, H, W = x_nchw.shape
    x = jnp.transpose(x_nchw, (0, 2, 3, 1)).reshape(-1, C)
    h = x @ w1.T + b1[None, :]
    mean = jnp.mean(h, axis=0, keepdims=True)
    var = jnp.mean((h - mean) ** 2, axis=0, keepdims=True)
    h = (h - mean) / jnp.sqrt(var + BN_EPS) * gamma[None, :] + beta[None, :]
    h = jnp.maximum(h, 0.0)
    y = h @ w2.T + b2[None, :]
    nrm = jnp.sqrt(jnp.sum(y * y, axis=1, keepdims=True))
    y = y / jnp.maximum(nrm, L2_EPS)
    return jnp.transpose(y.reshape(N, H, W, -1), (0, 3, 1, 2))


if __name__ == "__main__":
    # Small shapes consistent with ProjectionHead(dim_in=32, proj_dim=64).
    N, C, H, W = 2, 32, 16, 16
    PROJ = 64

    key = jax.random.PRNGKey(0)
    kx, k1, kb1, k2, kb2, kg, kbe = jax.random.split(key, 7)

    x = jax.random.normal(kx, (N, C, H, W), dtype=jnp.float32)
    # PyTorch Conv2d weight convention (C_out, C_in) with 1x1 kernels squeezed.
    w1 = jax.random.normal(k1, (C, C), dtype=jnp.float32) * 0.1
    b1 = jax.random.normal(kb1, (C,), dtype=jnp.float32) * 0.1
    gamma = 1.0 + 0.1 * jax.random.normal(kg, (C,), dtype=jnp.float32)
    beta = 0.1 * jax.random.normal(kbe, (C,), dtype=jnp.float32)
    w2 = jax.random.normal(k2, (PROJ, C), dtype=jnp.float32) * 0.1
    b2 = jax.random.normal(kb2, (PROJ,), dtype=jnp.float32) * 0.1

    ref = _reference_forward(x, w1, b1, gamma, beta, w2, b2)

    # 1) f32 matmul operands, recompute-conv1 path: tight reference match.
    out_f32 = jax.block_until_ready(
        projection_head_forward(x, w1, b1, gamma, beta, w2, b2,
                                compute_dtype=jnp.float32, spill_h=False))
    assert out_f32.shape == (N, PROJ, H, W)
    assert jnp.allclose(out_f32, ref, atol=1e-3, rtol=1e-3), "f32 mismatch"
    assert jnp.allclose(jnp.sqrt(jnp.sum(out_f32 * out_f32, axis=1)), 1.0, atol=1e-3)

    # 2) f32 operands, forced spill-h path (exercises the large-dim_in branch).
    out_spill = jax.block_until_ready(
        projection_head_forward(x, w1, b1, gamma, beta, w2, b2,
                                compute_dtype=jnp.float32, spill_h=True))
    assert jnp.allclose(out_spill, ref, atol=1e-3, rtol=1e-3), "spill-h mismatch"

    # 3) Default bf16 matmul operands + bf16 output (BN stats / apply, ReLU and
    #    the L2 norm stay in f32); looser tolerance.
    out_bf16 = jax.block_until_ready(
        projection_head_forward(x, w1, b1, gamma, beta, w2, b2,
                                out_dtype=jnp.bfloat16))
    assert out_bf16.shape == (N, PROJ, H, W)
    out_bf16_f = out_bf16.astype(jnp.float32)
    assert jnp.allclose(out_bf16_f, ref, atol=3e-2, rtol=3e-2), "bf16 mismatch"
    assert jnp.allclose(jnp.sqrt(jnp.sum(out_bf16_f * out_bf16_f, axis=1)),
                        1.0, atol=2e-2)

    print("KERNEL_OK")
</pallas_src>

<mosaic_0001>
module attributes {stable_mosaic.version = 11 : i64} {
  func.func @_stats_kernel(%arg0: i32, %arg1: i32, %arg2: memref<2x32x256xf32, #tpu.memory_space<vmem>>, %arg3: memref<32x32xf32, #tpu.memory_space<vmem>>, %arg4: memref<32x1xf32, #tpu.memory_space<vmem>>, %arg5: memref<1x32x1xf32, #tpu.memory_space<vmem>>, %arg6: memref<1x32x1xf32, #tpu.memory_space<vmem>>) attributes {dimension_semantics = [#tpu.dimension_semantics<parallel>, #tpu.dimension_semantics<arbitrary>], iteration_bounds = array<i64: 1, 1>, scalar_prefetch = 0 : i64, scratch_operands = 0 : i64, tpu.core_type = #tpu.core_type<tc>, window_params = [{transform_indices = @transform_0, window_bounds = array<i64: 2, 32, 256>}, {pipeline_mode = #tpu.pipeline_mode<synchronous>, transform_indices = @transform_1, window_bounds = array<i64: 32, 32>}, {pipeline_mode = #tpu.pipeline_mode<synchronous>, transform_indices = @transform_2, window_bounds = array<i64: 32, 1>}, {transform_indices = @transform_3, window_bounds = array<i64: 1, 32, 1>}, {transform_indices = @transform_4, window_bounds = array<i64: 1, 32, 1>}]} {
    %c0_i32 = arith.constant 0 : i32
    %0 = arith.cmpi eq, %arg1, %c0_i32 : i32
    %1 = arith.extui %0 : i1 to i32
    %c0_i32_0 = arith.constant 0 : i32
    %2 = arith.cmpi ne, %1, %c0_i32_0 : i32
    scf.if %2 {
      %cst_26 = arith.constant 0.000000e+00 : f32
      %35 = vector.broadcast %cst_26 : f32 to vector<1x32x1xf32>
      %c0_27 = arith.constant 0 : index
      %c0_28 = arith.constant 0 : index
      %c0_29 = arith.constant 0 : index
      %36 = vector.load %arg5[%c0_27, %c0_28, %c0_29] : memref<1x32x1xf32, #tpu.memory_space<vmem>>, vector<1x32x1xf32>
      tpu.vector_store %arg5[%c0_27, %c0_28, %c0_29], %35 {strides = array<i32>} : memref<1x32x1xf32, #tpu.memory_space<vmem>>, vector<1x32x1xf32>,
      %cst_30 = arith.constant 0.000000e+00 : f32
      %37 = vector.broadcast %cst_30 : f32 to vector<1x32x1xf32>
      %c0_31 = arith.constant 0 : index
      %c0_32 = arith.constant 0 : index
      %c0_33 = arith.constant 0 : index
      %38 = vector.load %arg6[%c0_31, %c0_32, %c0_33] : memref<1x32x1xf32, #tpu.memory_space<vmem>>, vector<1x32x1xf32>
      tpu.vector_store %arg6[%c0_31, %c0_32, %c0_33], %37 {strides = array<i32>} : memref<1x32x1xf32, #tpu.memory_space<vmem>>, vector<1x32x1xf32>,
    } else {
    }
    %c0 = arith.constant 0 : index
    %c0_1 = arith.constant 0 : index
    %3 = vector.load %arg3[%c0, %c0_1] : memref<32x32xf32, #tpu.memory_space<vmem>>, vector<32x32xf32>
    %c0_2 = arith.constant 0 : index
    %c0_3 = arith.constant 0 : index
    %4 = vector.load %arg4[%c0_2, %c0_3] : memref<32x1xf32, #tpu.memory_space<vmem>>, vector<32x1xf32>
    %c0_4 = arith.constant 0 : index
    %c0_5 = arith.constant 0 : index
    %c0_6 = arith.constant 0 : index
    %5 = vector.load %arg2[%c0_4, %c0_5, %c0_6] : memref<2x32x256xf32, #tpu.memory_space<vmem>>, vector<1x32x256xf32>
    %6 = vector.shape_cast %5 : vector<1x32x256xf32> to vector<32x256xf32>
    %cst = arith.constant dense<0.000000e+00> : vector<32x256xf32>
    %7 = tpu.matmul %3, %6, %cst {dimension_numbers = #tpu.dot_dimension_numbers<[1], [0], [0], [1], [0, 0, 1, 1], [], []>} : vector<32x32xf32>, vector<32x256xf32>, vector<32x256xf32> -> vector<32x256xf32>
    %8 = vector.broadcast %4 : vector<32x1xf32> to vector<32x256xf32>
    %9 = arith.addf %7, %8 : vector<32x256xf32>
    %c1 = arith.constant 1 : index
    %c0_7 = arith.constant 0 : index
    %c0_8 = arith.constant 0 : index
    %10 = vector.load %arg2[%c1, %c0_7, %c0_8] : memref<2x32x256xf32, #tpu.memory_space<vmem>>, vector<1x32x256xf32>
    %11 = vector.shape_cast %10 : vector<1x32x256xf32> to vector<32x256xf32>
    %cst_9 = arith.constant dense<0.000000e+00> : vector<32x256xf32>
    %12 = tpu.matmul %3, %11, %cst_9 {dimension_numbers = #tpu.dot_dimension_numbers<[1], [0], [0], [1], [0, 0, 1, 1], [], []>} : vector<32x32xf32>, vector<32x256xf32>, vector<32x256xf32> -> vector<32x256xf32>
    %13 = vector.broadcast %4 : vector<32x1xf32> to vector<32x256xf32>
    %14 = arith.addf %12, %13 : vector<32x256xf32>
    %cst_10 = arith.constant dense<0.000000e+00> : vector<32xf32>
    %15 = vector.multi_reduction <add>, %9, %cst_10 [1] : vector<32x256xf32> to vector<32xf32>
    %16 = vector.shape_cast %15 : vector<32xf32> to vector<32x1xf32>
    %17 = arith.mulf %9, %9 : vector<32x256xf32>
    %cst_11 = arith.constant dense<0.000000e+00> : vector<32xf32>
    %18 = vector.multi_reduction <add>, %17, %cst_11 [1] : vector<32x256xf32> to vector<32xf32>
    %19 = vector.shape_cast %18 : vector<32xf32> to vector<32x1xf32>
    %cst_12 = arith.constant dense<0.000000e+00> : vector<32xf32>
    %20 = vector.multi_reduction <add>, %14, %cst_12 [1] : vector<32x256xf32> to vector<32xf32>
    %21 = vector.shape_cast %20 : vector<32xf32> to vector<32x1xf32>
    %22 = arith.mulf %14, %14 : vector<32x256xf32>
    %cst_13 = arith.constant dense<0.000000e+00> : vector<32xf32>
    %23 = vector.multi_reduction <add>, %22, %cst_13 [1] : vector<32x256xf32> to vector<32xf32>
    %24 = vector.shape_cast %23 : vector<32xf32> to vector<32x1xf32>
    %25 = arith.addf %16, %21 : vector<32x1xf32>
    %26 = arith.addf %19, %24 : vector<32x1xf32>
    %c0_14 = arith.constant 0 : index
    %c0_15 = arith.constant 0 : index
    %c0_16 = arith.constant 0 : index
    %27 = vector.load %arg5[%c0_14, %c0_15, %c0_16] : memref<1x32x1xf32, #tpu.memory_space<vmem>>, vector<1x32x1xf32>
    %28 = vector.shape_cast %25 : vector<32x1xf32> to vector<1x32x1xf32>
    %29 = arith.addf %27, %28 : vector<1x32x1xf32>
    %c0_17 = arith.constant 0 : index
    %c0_18 = arith.constant 0 : index
    %c0_19 = arith.constant 0 : index
    %30 = vector.load %arg5[%c0_17, %c0_18, %c0_19] : memref<1x32x1xf32, #tpu.memory_space<vmem>>, vector<1x32x1xf32>
    tpu.vector_store %arg5[%c0_17, %c0_18, %c0_19], %29 {strides = array<i32>} : memref<1x32x1xf32, #tpu.memory_space<vmem>>, vector<1x32x1xf32>,
    %c0_20 = arith.constant 0 : index
    %c0_21 = arith.constant 0 : index
    %c0_22 = arith.constant 0 : index
    %31 = vector.load %arg6[%c0_20, %c0_21, %c0_22] : memref<1x32x1xf32, #tpu.memory_space<vmem>>, vector<1x32x1xf32>
    %32 = vector.shape_cast %26 : vector<32x1xf32> to vector<1x32x1xf32>
    %33 = arith.addf %31, %32 : vector<1x32x1xf32>
    %c0_23 = arith.constant 0 : index
    %c0_24 = arith.constant 0 : index
    %c0_25 = arith.constant 0 : index
    %34 = vector.load %arg6[%c0_23, %c0_24, %c0_25] : memref<1x32x1xf32, #tpu.memory_space<vmem>>, vector<1x32x1xf32>
    tpu.vector_store %arg6[%c0_23, %c0_24, %c0_25], %33 {strides = array<i32>} : memref<1x32x1xf32, #tpu.memory_space<vmem>>, vector<1x32x1xf32>,
    return
  }
  func.func @transform_0(%arg0: i32, %arg1: i32) -> (i32, i32, i32) {
    %c0_i32 = arith.constant 0 : i32
    %c0_i32_0 = arith.constant 0 : i32
    return %arg0, %c0_i32, %arg1 : i32, i32, i32
  }
  func.func @transform_1(%arg0: i32, %arg1: i32) -> (i32, i32) {
    %c0_i32 = arith.constant 0 : i32
    %c0_i32_0 = arith.constant 0 : i32
    %c0_i32_1 = arith.constant 0 : i32
    return %c0_i32, %c0_i32_0 : i32, i32
  }
  func.func @transform_2(%arg0: i32, %arg1: i32) -> (i32, i32) {
    %c0_i32 = arith.constant 0 : i32
    %c0_i32_0 = arith.constant 0 : i32
    %c0_i32_1 = arith.constant 0 : i32
    return %c0_i32, %c0_i32_0 : i32, i32
  }
  func.func @transform_3(%arg0: i32, %arg1: i32) -> (i32, i32, i32) {
    %c0_i32 = arith.constant 0 : i32
    %c0_i32_0 = arith.constant 0 : i32
    %c0_i32_1 = arith.constant 0 : i32
    return %arg0, %c0_i32, %c0_i32_0 : i32, i32, i32
  }
  func.func @transform_4(%arg0: i32, %arg1: i32) -> (i32, i32, i32) {
    %c0_i32 = arith.constant 0 : i32
    %c0_i32_0 = arith.constant 0 : i32
    %c0_i32_1 = arith.constant 0 : i32
    return %arg0, %c0_i32, %c0_i32_0 : i32, i32, i32
  }
}

module attributes {stable_mosaic.version = 11 : i64} {
  func.func @_stats_kernel(%arg0: i32, %arg1: i32, %arg2: memref<2x32x256xf32, #tpu.memory_space<vmem>>, %arg3: memref<32x32xf32, #tpu.memory_space<vmem>>, %arg4: memref<32x1xf32, #tpu.memory_space<vmem>>, %arg5: memref<1x32x1xf32, #tpu.memory_space<vmem>>, %arg6: memref<1x32x1xf32, #tpu.memory_space<vmem>>) attributes {dimension_semantics = [#tpu.dimension_semantics<parallel>, #tpu.dimension_semantics<arbitrary>], iteration_bounds = array<i64: 1, 1>, scalar_prefetch = 0 : i64, scratch_operands = 0 : i64, tpu.core_type = #tpu.core_type<tc>, window_params = [{transform_indices = @transform_0, window_bounds = array<i64: 2, 32, 256>}, {pipeline_mode = #tpu.pipeline_mode<synchronous>, transform_indices = @transform_1, window_bounds = array<i64: 32, 32>}, {pipeline_mode = #tpu.pipeline_mode<synchronous>, transform_indices = @transform_2, window_bounds = array<i64: 32, 1>}, {transform_indices = @transform_3, window_bounds = array<i64: 1, 32, 1>}, {transform_indices = @transform_4, window_bounds = array<i64: 1, 32, 1>}]} {
    %c0_i32 = arith.constant 0 : i32
    %0 = arith.cmpi eq, %arg1, %c0_i32 : i32
    %1 = arith.extui %0 : i1 to i32
    %c0_i32_0 = arith.constant 0 : i32
    %2 = arith.cmpi ne, %1, %c0_i32_0 : i32
    scf.if %2 {
      %cst_26 = arith.constant 0.000000e+00 : f32
      %35 = vector.broadcast %cst_26 : f32 to vector<1x32x1xf32>
      %c0_27 = arith.constant 0 : index
      %c0_28 = arith.constant 0 : index
      %c0_29 = arith.constant 0 : index
      %36 = vector.load %arg5[%c0_27, %c0_28, %c0_29] : memref<1x32x1xf32, #tpu.memory_space<vmem>>, vector<1x32x1xf32>
      tpu.vector_store %arg5[%c0_27, %c0_28, %c0_29], %35 {strides = array<i32>} : memref<1x32x1xf32, #tpu.memory_space<vmem>>, vector<1x32x1xf32>,
      %cst_30 = arith.constant 0.000000e+00 : f32
      %37 = vector.broadcast %cst_30 : f32 to vector<1x32x1xf32>
      %c0_31 = arith.constant 0 : index
      %c0_32 = arith.constant 0 : index
      %c0_33 = arith.constant 0 : index
      %38 = vector.load %arg6[%c0_31, %c0_32, %c0_33] : memref<1x32x1xf32, #tpu.memory_space<vmem>>, vector<1x32x1xf32>
      tpu.vector_store %arg6[%c0_31, %c0_32, %c0_33], %37 {strides = array<i32>} : memref<1x32x1xf32, #tpu.memory_space<vmem>>, vector<1x32x1xf32>,
    } else {
    }
    %c0 = arith.constant 0 : index
    %c0_1 = arith.constant 0 : index
    %3 = vector.load %arg3[%c0, %c0_1] : memref<32x32xf32, #tpu.memory_space<vmem>>, vector<32x32xf32>
    %c0_2 = arith.constant 0 : index
    %c0_3 = arith.constant 0 : index
    %4 = vector.load %arg4[%c0_2, %c0_3] : memref<32x1xf32, #tpu.memory_space<vmem>>, vector<32x1xf32>
    %c0_4 = arith.constant 0 : index
    %c0_5 = arith.constant 0 : index
    %c0_6 = arith.constant 0 : index
    %5 = vector.load %arg2[%c0_4, %c0_5, %c0_6] : memref<2x32x256xf32, #tpu.memory_space<vmem>>, vector<1x32x256xf32>
    %6 = vector.shape_cast %5 : vector<1x32x256xf32> to vector<32x256xf32>
    %cst = arith.constant dense<0.000000e+00> : vector<32x256xf32>
    %7 = tpu.matmul %3, %6, %cst {dimension_numbers = #tpu.dot_dimension_numbers<[1], [0], [0], [1], [0, 0, 1, 1], [], []>} : vector<32x32xf32>, vector<32x256xf32>, vector<32x256xf32> -> vector<32x256xf32>
    %8 = vector.broadcast %4 : vector<32x1xf32> to vector<32x256xf32>
    %9 = arith.addf %7, %8 : vector<32x256xf32>
    %c1 = arith.constant 1 : index
    %c0_7 = arith.constant 0 : index
    %c0_8 = arith.constant 0 : index
    %10 = vector.load %arg2[%c1, %c0_7, %c0_8] : memref<2x32x256xf32, #tpu.memory_space<vmem>>, vector<1x32x256xf32>
    %11 = vector.shape_cast %10 : vector<1x32x256xf32> to vector<32x256xf32>
    %cst_9 = arith.constant dense<0.000000e+00> : vector<32x256xf32>
    %12 = tpu.matmul %3, %11, %cst_9 {dimension_numbers = #tpu.dot_dimension_numbers<[1], [0], [0], [1], [0, 0, 1, 1], [], []>} : vector<32x32xf32>, vector<32x256xf32>, vector<32x256xf32> -> vector<32x256xf32>
    %13 = vector.broadcast %4 : vector<32x1xf32> to vector<32x256xf32>
    %14 = arith.addf %12, %13 : vector<32x256xf32>
    %cst_10 = arith.constant dense<0.000000e+00> : vector<32xf32>
    %15 = vector.multi_reduction <add>, %9, %cst_10 [1] : vector<32x256xf32> to vector<32xf32>
    %16 = vector.shape_cast %15 : vector<32xf32> to vector<32x1xf32>
    %17 = arith.mulf %9, %9 : vector<32x256xf32>
    %cst_11 = arith.constant dense<0.000000e+00> : vector<32xf32>
    %18 = vector.multi_reduction <add>, %17, %cst_11 [1] : vector<32x256xf32> to vector<32xf32>
    %19 = vector.shape_cast %18 : vector<32xf32> to vector<32x1xf32>
    %cst_12 = arith.constant dense<0.000000e+00> : vector<32xf32>
    %20 = vector.multi_reduction <add>, %14, %cst_12 [1] : vector<32x256xf32> to vector<32xf32>
    %21 = vector.shape_cast %20 : vector<32xf32> to vector<32x1xf32>
    %22 = arith.mulf %14, %14 : vector<32x256xf32>
    %cst_13 = arith.constant dense<0.000000e+00> : vector<32xf32>
    %23 = vector.multi_reduction <add>, %22, %cst_13 [1] : vector<32x256xf32> to vector<32xf32>
    %24 = vector.shape_cast %23 : vector<32xf32> to vector<32x1xf32>
    %25 = arith.addf %16, %21 : vector<32x1xf32>
    %26 = arith.addf %19, %24 : vector<32x1xf32>
    %c0_14 = arith.constant 0 : index
    %c0_15 = arith.constant 0 : index
    %c0_16 = arith.constant 0 : index
    %27 = vector.load %arg5[%c0_14, %c0_15, %c0_16] : memref<1x32x1xf32, #tpu.memory_space<vmem>>, vector<1x32x1xf32>
    %28 = vector.shape_cast %25 : vector<32x1xf32> to vector<1x32x1xf32>
    %29 = arith.addf %27, %28 : vector<1x32x1xf32>
    %c0_17 = arith.constant 0 : index
    %c0_18 = arith.constant 0 : index
    %c0_19 = arith.constant 0 : index
    %30 = vector.load %arg5[%c0_17, %c0_18, %c0_19] : memref<1x32x1xf32, #tpu.memory_space<vmem>>, vector<1x32x1xf32>
    tpu.vector_store %arg5[%c0_17, %c0_18, %c0_19], %29 {strides = array<i32>} : memref<1x32x1xf32, #tpu.memory_space<vmem>>, vector<1x32x1xf32>,
    %c0_20 = arith.constant 0 : index
    %c0_21 = arith.constant 0 : index
    %c0_22 = arith.constant 0 : index
    %31 = vector.load %arg6[%c0_20, %c0_21, %c0_22] : memref<1x32x1xf32, #tpu.memory_space<vmem>>, vector<1x32x1xf32>
    %32 = vector.shape_cast %26 : vector<32x1xf32> to vector<1x32x1xf32>
    %33 = arith.addf %31, %32 : vector<1x32x1xf32>
    %c0_23 = arith.constant 0 : index
    %c0_24 = arith.constant 0 : index
    %c0_25 = arith.constant 0 : index
    %34 = vector.load %arg6[%c0_23, %c0_24, %c0_25] : memref<1x32x1xf32, #tpu.memory_space<vmem>>, vector<1x32x1xf32>
    tpu.vector_store %arg6[%c0_23, %c0_24, %c0_25], %33 {strides = array<i32>} : memref<1x32x1xf32, #tpu.memory_space<vmem>>, vector<1x32x1xf32>,
    return
  }
  func.func @transform_0(%arg0: i32, %arg1: i32) -> (i32, i32, i32) {
    %c0_i32 = arith.constant 0 : i32
    %c0_i32_0 = arith.constant 0 : i32
    return %arg0, %c0_i32, %arg1 : i32, i32, i32
  }
  func.func @transform_1(%arg0: i32, %arg1: i32) -> (i32, i32) {
    %c0_i32 = arith.constant 0 : i32
    %c0_i32_0 = arith.constant 0 : i32
    %c0_i32_1 = arith.constant 0 : i32
    return %c0_i32, %c0_i32_0 : i32, i32
  }
  func.func @transform_2(%arg0: i32, %arg1: i32) -> (i32, i32) {
    %c0_i32 = arith.constant 0 : i32
    %c0_i32_0 = arith.constant 0 : i32
    %c0_i32_1 = arith.constant 0 : i32
    return %c0_i32, %c0_i32_0 : i32, i32
  }
  func.func @transform_3(%arg0: i32, %arg1: i32) -> (i32, i32, i32) {
    %c0_i32 = arith.constant 0 : i32
    %c0_i32_0 = arith.constant 0 : i32
    %c0_i32_1 = arith.constant 0 : i32
    return %arg0, %c0_i32, %c0_i32_0 : i32, i32, i32
  }
  func.func @transform_4(%arg0: i32, %arg1: i32) -> (i32, i32, i32) {
    %c0_i32 = arith.constant 0 : i32
    %c0_i32_0 = arith.constant 0 : i32
    %c0_i32_1 = arith.constant 0 : i32
    return %arg0, %c0_i32, %c0_i32_0 : i32, i32, i32
  }
}

</mosaic_0001>

<llo_original>
// kernel: tpu_custom_call.1
$region0: #{tpu_custom_call.1}
  #allocation0 [shape = 'u32[]', space=smem, size = 0x4, offset = 0x4, fixed_abs, tag = 'smem constant byte address 0x4 - core index']
  #allocation1 [shape = 'u32[144,128]{1,0:T(1,128)}', space=vmem, size = 0x12000, scoped, tag = 'internal scratch']
  %s0 = inlined_call_operand.hbm [shape: f32[2,32,256], index: 0, kind: input, shape index: {}]
  %s1 = inlined_call_operand.vmem [shape: f32[32,32], index: 1, kind: input, shape index: {}]
  %s2 = inlined_call_operand.vmem [shape: f32[32,1], index: 2, kind: input, shape index: {}]
  %s3 = inlined_call_operand.vmem [shape: f32[1,32,1], index: 3, kind: output, shape index: {0}]
  %s4 = inlined_call_operand.vmem [shape: f32[1,32,1], index: 4, kind: output, shape index: {1}]
  %5 = xla_tuple %s3, %s4
  %s6 = sld [smem:[#allocation0]]
  $region38: #{tpu_custom_call.1} parent=0
    _
  %s8 = ssub.s32 1, %s6
  %s9 = scalar_select 0, %s8, %s6
  $region1: #{tpu_custom_call.1} parent=0
    #allocation2 [shape = 'u8[65536]{0}', space=vmem, size = 0x10000, scoped, tag = 'input window, operand 0, single buffered']
    #allocation3 [shape = 's32[1]{0}', space=sflag, size = 0x4, scoped, tag = 'scoped memory for tpu_custom_call.1']
    %10 = vsyncpa [#allocation3], 0
    // Predicated region
    $region2: #{tpu_custom_call.1} parent=1 // pred_check
      _
    $region3: #{tpu_custom_call.1} parent=1 // pred_check_branch
      %12 = sbr.rel (0) target = $region5
    $region4: #{tpu_custom_call.1} parent=1 // pred_region
      %s14 = ssub.s32 2048, 2048
      %15 = vsyncadd [#allocation3], %s14
      %s16 = sshll.u32 [#allocation2], 4
      %s17 = int_to_ptr.vmem [resolvable:$true] %s16
      %22 = dma.hbm_to_vmem [thread:$0]  %s0, 2048, %s17, [#allocation3], 256, 256, 16
    $region5: #{tpu_custom_call.1} parent=1 // pred_fallthru
      _
    // Predicated region
    $region6: #{tpu_custom_call.1} parent=1 // pred_check
      _
    $region7: #{tpu_custom_call.1} parent=1 // pred_check_branch
      %24 = sbr.rel (0) target = $region9
    $region8: #{tpu_custom_call.1} parent=1 // pred_region
      _
    $region9: #{tpu_custom_call.1} parent=1 // pred_fallthru
      _
    // Predicated region
    $region10: #{tpu_custom_call.1} parent=1 // pred_check
      _
    $region11: #{tpu_custom_call.1} parent=1 // pred_check_branch
      %26 = sbr.rel (0) target = $region13
    $region12: #{tpu_custom_call.1} parent=1 // pred_region
      _
    $region13: #{tpu_custom_call.1} parent=1 // pred_fallthru
      _
    // Predicated region
    $region14: #{tpu_custom_call.1} parent=1 // pred_check
      _
    $region15: #{tpu_custom_call.1} parent=1 // pred_check_branch
      %28 = sbr.rel (0) target = $region17
    $region16: #{tpu_custom_call.1} parent=1 // pred_region
      %29 = dma.done [#allocation3], 2048
    $region17: #{tpu_custom_call.1} parent=1 // pred_fallthru
      _
    %p30 = scmp.eq.s32.totalorder 0, 0
    // Predicated region
    $region18: #{tpu_custom_call.1} parent=1 // pred_check
      %p31 = pneg %p30
    $region19: #{tpu_custom_call.1} parent=1 // pred_check_branch
      %33 = sbr.rel (%p31) target = $region21
    $region20: #{tpu_custom_call.1} parent=1 // pred_region
      %vm34 = vcmask 7168
      %35 = vst.msk [vmem:[%s3] sm:$0xff] %vm34, 0.0
      %36 = vst.msk [vmem:[%s3 + $0x8] sm:$0xff] %vm34, 0.0
      %37 = vst.msk [vmem:[%s3 + $0x10] sm:$0xff] %vm34, 0.0
      %38 = vst.msk [vmem:[%s3 + $0x18] sm:$0xff] %vm34, 0.0
      %39 = vst.msk [vmem:[%s4] sm:$0xff] %vm34, 0.0
      %40 = vst.msk [vmem:[%s4 + $0x8] sm:$0xff] %vm34, 0.0
      %41 = vst.msk [vmem:[%s4 + $0x10] sm:$0xff] %vm34, 0.0
      %42 = vst.msk [vmem:[%s4 + $0x18] sm:$0xff] %vm34, 0.0
    $region21: #{tpu_custom_call.1} parent=1 // pred_fallthru
      _
    %v43 = vld [vmem:[%s1] sm:$0xff]
    %v44 = vld [vmem:[%s1 + $0x8] sm:$0xff]
    %v45 = vld [vmem:[%s1 + $0x10] sm:$0xff]
    %v46 = vld [vmem:[%s1 + $0x18] sm:$0xff]
    %v47 = vld [vmem:[%s2] sm:$0xff]
    %v48 = vld [vmem:[%s2 + $0x8] sm:$0xff]
    %v49 = vld [vmem:[%s2 + $0x10] sm:$0xff]
    %v50 = vld [vmem:[%s2 + $0x18] sm:$0xff]
    %v51 = vld [vmem:[#allocation2] sm:$0xff]
    %v52 = vld [vmem:[#allocation2 + $0x8] sm:$0xff]
    %v53 = vld [vmem:[#allocation2 + $0x10] sm:$0xff]
    %v54 = vld [vmem:[#allocation2 + $0x18] sm:$0xff]
    %v55 = vld [vmem:[#allocation2 + $0x20] sm:$0xff]
    %v56 = vld [vmem:[#allocation2 + $0x28] sm:$0xff]
    %v57 = vld [vmem:[#allocation2 + $0x30] sm:$0xff]
    %v58 = vld [vmem:[#allocation2 + $0x38] sm:$0xff]
    %60 = vset.pattern.permute.xlu0 0
    %61 = vperm.xlu0 %60, %v47
    %v62 = vpop.permute.xlu0 %61
    %65 = vset.pattern.permute.xlu0 0
    %66 = vperm.xlu0 %65, %v48
    %v67 = vpop.permute.xlu0 %66
    %70 = vset.pattern.permute.xlu0 0
    %71 = vperm.xlu0 %70, %v49
    %v72 = vpop.permute.xlu0 %71
    %75 = vset.pattern.permute.xlu0 0
    %76 = vperm.xlu0 %75, %v50
    %v77 = vpop.permute.xlu0 %76
    %vm79 = vcmask 261120
    %v81 = vsel %vm79, %v43, 0
    %v84 = vsel %vm79, %v44, 0
    %v87 = vsel %vm79, %v45, 0
    %v90 = vsel %vm79, %v46, 0
    %92 = vmatprep.subr.mxu0 %v52
    %93 = vmatpush1.msra.mxu0 %v51
    %94 = vmatprep.subr.mxu0 %v54
    %95 = vmatpush1.msra.mxu0 %v53
    %96 = vmatprep.subr.mxu0 %v56
    %97 = vmatpush1.msra.mxu0 %v55
    %98 = vmatprep.subr.mxu0 %v58
    %99 = vmatpush1.msra.mxu0 %v57
    %100 = vmatprep.subr.mxu0 0.0
    %101 = vmatpush1.msra.mxu0 0.0
    %102 = vmatprep.subr.mxu0 0.0
    %103 = vmatpush1.msra.mxu0 0.0
    %104 = vmatprep.subr.mxu0 0.0
    %105 = vmatpush1.msra.mxu0 0.0
    %106 = vmatprep.subr.mxu0 0.0
    %107 = vmatpush1.msra.mxu0 0.0
    %108 = vmatprep.subr.mxu0 0.0
    %109 = vmatpush1.msra.mxu0 0.0
    %110 = vmatprep.subr.mxu0 0.0
    %111 = vmatpush1.msra.mxu0 0.0
    %112 = vmatprep.subr.mxu0 0.0
    %113 = vmatpush1.msra.mxu0 0.0
    %114 = vmatprep.subr.mxu0 0.0
    %115 = vmatpush1.msra.mxu0 0.0
    %116 = vmatprep.subr.mxu0 0.0
    %117 = vmatpush1.msra.mxu0 0.0
    %118 = vmatprep.subr.mxu0 0.0
    %119 = vmatpush1.msra.mxu0 0.0
    %120 = vmatprep.subr.mxu0 0.0
    %121 = vmatpush1.msra.mxu0 0.0
    %122 = vmatprep.subr.mxu0 0.0
    %123 = vmatpush1.msra.mxu0 0.0
    %124 = vmatprep.subr.mxu0 0.0
    %125 = vmatpush1.msra.mxu0 0.0
    %126 = vmatprep.subr.mxu0 0.0
    %127 = vmatpush1.msra.mxu0 0.0
    %128 = vmatprep.subr.mxu0 0.0
    %129 = vmatpush1.msra.mxu0 0.0
    %130 = vmatprep.subr.mxu0 0.0
    %131 = vmatpush1.msra.mxu0 0.0
    %132 = vmatprep.subr.mxu0 0.0
    %133 = vmatpush1.msra.mxu0 0.0
    %134 = vmatprep.subr.mxu0 0.0
    %135 = vmatpush1.msra.mxu0 0.0
    %136 = vmatprep.subr.mxu0 0.0
    %137 = vmatpush1.msra.mxu0 0.0
    %138 = vmatprep.subr.mxu0 0.0
    %139 = vmatpush1.msra.mxu0 0.0
    %140 = vmatprep.subr.mxu0 0.0
    %141 = vmatpush1.msra.mxu0 0.0
    %142 = vmatprep.subr.mxu0 0.0
    %143 = vmatpush1.msra.mxu0 0.0
    %144 = vmatprep.subr.mxu0 0.0
    %145 = vmatpush1.msra.mxu0 0.0
    %146 = vmatprep.subr.mxu0 0.0
    %147 = vmatpush1.msra.mxu0 0.0
    %148 = vmatprep.subr.mxu0 0.0
    %149 = vmatpush1.msra.mxu0 0.0
    %150 = vmatprep.subr.mxu0 0.0
    %151 = vmatpush1.msra.mxu0 0.0
    %152 = vmatprep.subr.mxu0 0.0
    %153 = vmatpush1.msra.mxu0 0.0
    %154 = vmatprep.subr.mxu0 0.0
    %155 = vmatpush1.msra.mxu0 0.0
    %156 = vmatprep.mubr.f32.mxu0 0.0
    %157 = vmatmul.mubr.f32.gmra.mrb[0].mxu0 %v81
    %v158 = vpop.f32.mrb[0].mxu0
    %v159 = vadd.f32 %v62, %v158
    %v160 = vpop.f32.mrb[0].mxu0
    %v161 = vadd.f32 %v62, %v160
    %162 = vmatprep.mubr.f32.mxu0 0.0
    %163 = vmatmul.mubr.f32.gmra.mrb[0].mxu0 %v84
    %v164 = vpop.f32.mrb[0].mxu0
    %v165 = vadd.f32 %v67, %v164
    %v166 = vpop.f32.mrb[0].mxu0
    %v167 = vadd.f32 %v67, %v166
    %168 = vmatprep.mubr.f32.mxu0 0.0
    %169 = vmatmul.mubr.f32.gmra.mrb[0].mxu0 %v87
    %v170 = vpop.f32.mrb[0].mxu0
    %v171 = vadd.f32 %v72, %v170
    %v172 = vpop.f32.mrb[0].mxu0
    %v173 = vadd.f32 %v72, %v172
    %174 = vmatprep.mubr.f32.mxu0 0.0
    %175 = vmatmul.mubr.f32.gmra.mrb[0].mxu0 %v90
    %v176 = vpop.f32.mrb[0].mxu0
    %v177 = vadd.f32 %v77, %v176
    %v178 = vpop.f32.mrb[0].mxu0
    %v179 = vadd.f32 %v77, %v178
    %180 = vdwg.mxu0
    %s181 = scalar_lea.vmem [#allocation2], 64
    %v182 = vld [vmem:[%s181] sm:$0xff]
    %v183 = vld [vmem:[%s181 + $0x8] sm:$0xff]
    %v184 = vld [vmem:[%s181 + $0x10] sm:$0xff]
    %v185 = vld [vmem:[%s181 + $0x18] sm:$0xff]
    %v186 = vld [vmem:[%s181 + $0x20] sm:$0xff]
    %v187 = vld [vmem:[%s181 + $0x28] sm:$0xff]
    %v188 = vld [vmem:[%s181 + $0x30] sm:$0xff]
    %v189 = vld [vmem:[%s181 + $0x38] sm:$0xff]
    %190 = vmatprep.subr.mxu0 %v183
    %191 = vmatpush1.msra.mxu0 %v182
    %192 = vmatprep.subr.mxu0 %v185
    %193 = vmatpush1.msra.mxu0 %v184
    %194 = vmatprep.subr.mxu0 %v187
    %195 = vmatpush1.msra.mxu0 %v186
    %196 = vmatprep.subr.mxu0 %v189
    %197 = vmatpush1.msra.mxu0 %v188
    %198 = vmatprep.subr.mxu0 0.0
    %199 = vmatpush1.msra.mxu0 0.0
    %200 = vmatprep.subr.mxu0 0.0
    %201 = vmatpush1.msra.mxu0 0.0
    %202 = vmatprep.subr.mxu0 0.0
    %203 = vmatpush1.msra.mxu0 0.0
    %204 = vmatprep.subr.mxu0 0.0
    %205 = vmatpush1.msra.mxu0 0.0
    %206 = vmatprep.subr.mxu0 0.0
    %207 = vmatpush1.msra.mxu0 0.0
    %208 = vmatprep.subr.mxu0 0.0
    %209 = vmatpush1.msra.mxu0 0.0
    %210 = vmatprep.subr.mxu0 0.0
    %211 = vmatpush1.msra.mxu0 0.0
    %212 = vmatprep.subr.mxu0 0.0
    %213 = vmatpush1.msra.mxu0 0.0
    %214 = vmatprep.subr.mxu0 0.0
    %215 = vmatpush1.msra.mxu0 0.0
    %216 = vmatprep.subr.mxu0 0.0
    %217 = vmatpush1.msra.mxu0 0.0
    %218 = vmatprep.subr.mxu0 0.0
    %219 = vmatpush1.msra.mxu0 0.0
    %220 = vmatprep.subr.mxu0 0.0
    %221 = vmatpush1.msra.mxu0 0.0
    %222 = vmatprep.subr.mxu0 0.0
    %223 = vmatpush1.msra.mxu0 0.0
    %224 = vmatprep.subr.mxu0 0.0
    %225 = vmatpush1.msra.mxu0 0.0
    %226 = vmatprep.subr.mxu0 0.0
    %227 = vmatpush1.msra.mxu0 0.0
    %228 = vmatprep.subr.mxu0 0.0
    %229 = vmatpush1.msra.mxu0 0.0
    %230 = vmatprep.subr.mxu0 0.0
    %231 = vmatpush1.msra.mxu0 0.0
    %232 = vmatprep.subr.mxu0 0.0
    %233 = vmatpush1.msra.mxu0 0.0
    %234 = vmatprep.subr.mxu0 0.0
    %235 = vmatpush1.msra.mxu0 0.0
    %236 = vmatprep.subr.mxu0 0.0
    %237 = vmatpush1.msra.mxu0 0.0
    %238 = vmatprep.subr.mxu0 0.0
    %239 = vmatpush1.msra.mxu0 0.0
    %240 = vmatprep.subr.mxu0 0.0
    %241 = vmatpush1.msra.mxu0 0.0
    %242 = vmatprep.subr.mxu0 0.0
    %243 = vmatpush1.msra.mxu0 0.0
    %244 = vmatprep.subr.mxu0 0.0
    %245 = vmatpush1.msra.mxu0 0.0
    %246 = vmatprep.subr.mxu0 0.0
    %247 = vmatpush1.msra.mxu0 0.0
    %248 = vmatprep.subr.mxu0 0.0
    %249 = vmatpush1.msra.mxu0 0.0
    %250 = vmatprep.subr.mxu0 0.0
    %251 = vmatpush1.msra.mxu0 0.0
    %252 = vmatprep.subr.mxu0 0.0
    %253 = vmatpush1.msra.mxu0 0.0
    %254 = vmatprep.mubr.f32.mxu0 0.0
    %255 = vmatmul.mubr.f32.gmra.mrb[0].mxu0 %v81
    %v256 = vpop.f32.mrb[0].mxu0
    %v257 = vadd.f32 %v62, %v256
    %v258 = vpop.f32.mrb[0].mxu0
    %v259 = vadd.f32 %v62, %v258
    %260 = vmatprep.mubr.f32.mxu0 0.0
    %261 = vmatmul.mubr.f32.gmra.mrb[0].mxu0 %v84
    %v262 = vpop.f32.mrb[0].mxu0
    %v263 = vadd.f32 %v67, %v262
    %v264 = vpop.f32.mrb[0].mxu0
    %v265 = vadd.f32 %v67, %v264
    %266 = vmatprep.mubr.f32.mxu0 0.0
    %267 = vmatmul.mubr.f32.gmra.mrb[0].mxu0 %v87
    %v268 = vpop.f32.mrb[0].mxu0
    %v269 = vadd.f32 %v72, %v268
    %v270 = vpop.f32.mrb[0].mxu0
    %v271 = vadd.f32 %v72, %v270
    %272 = vmatprep.mubr.f32.mxu0 0.0
    %273 = vmatmul.mubr.f32.gmra.mrb[0].mxu0 %v90
    %v274 = vpop.f32.mrb[0].mxu0
    %v275 = vadd.f32 %v77, %v274
    %v276 = vpop.f32.mrb[0].mxu0
    %v277 = vadd.f32 %v77, %v276
    %278 = vdwg.mxu0
    %v279 = vadd.f32 %v159, %v161
    %280 = vadd.xlane.f32.xlu0 %v279
    %v281 = vpop.xlane.xlu0 %280
    %v282 = vadd.f32 %v165, %v167
    %283 = vadd.xlane.f32.xlu0 %v282
    %v284 = vpop.xlane.xlu0 %283
    %v285 = vadd.f32 %v171, %v173
    %286 = vadd.xlane.f32.xlu0 %v285
    %v287 = vpop.xlane.xlu0 %286
    %v288 = vadd.f32 %v177, %v179
    %289 = vadd.xlane.f32.xlu0 %v288
    %v290 = vpop.xlane.xlu0 %289
    %v291 = vmul.f32 %v159, %v159
    %v292 = vmul.f32 %v161, %v161
    %v293 = vmul.f32 %v165, %v165
    %v294 = vmul.f32 %v167, %v167
    %v295 = vmul.f32 %v171, %v171
    %v296 = vmul.f32 %v173, %v173
    %v297 = vmul.f32 %v177, %v177
    %v298 = vmul.f32 %v179, %v179
    %v299 = vadd.f32 %v291, %v292
    %300 = vadd.xlane.f32.xlu0 %v299
    %v301 = vpop.xlane.xlu0 %300
    %v302 = vadd.f32 %v293, %v294
    %303 = vadd.xlane.f32.xlu0 %v302
    %v304 = vpop.xlane.xlu0 %303
    %v305 = vadd.f32 %v295, %v296
    %306 = vadd.xlane.f32.xlu0 %v305
    %v307 = vpop.xlane.xlu0 %306
    %v308 = vadd.f32 %v297, %v298
    %309 = vadd.xlane.f32.xlu0 %v308
    %v310 = vpop.xlane.xlu0 %309
    %v311 = vadd.f32 %v257, %v259
    %312 = vadd.xlane.f32.xlu0 %v311
    %v313 = vpop.xlane.xlu0 %312
    %v314 = vadd.f32 %v263, %v265
    %315 = vadd.xlane.f32.xlu0 %v314
    %v316 = vpop.xlane.xlu0 %315
    %v317 = vadd.f32 %v269, %v271
    %318 = vadd.xlane.f32.xlu0 %v317
    %v319 = vpop.xlane.xlu0 %318
    %v320 = vadd.f32 %v275, %v277
    %321 = vadd.xlane.f32.xlu0 %v320
    %v322 = vpop.xlane.xlu0 %321
    %v323 = vmul.f32 %v257, %v257
    %v324 = vmul.f32 %v259, %v259
    %v325 = vmul.f32 %v263, %v263
    %v326 = vmul.f32 %v265, %v265
    %v327 = vmul.f32 %v269, %v269
    %v328 = vmul.f32 %v271, %v271
    %v329 = vmul.f32 %v275, %v275
    %v330 = vmul.f32 %v277, %v277
    %v331 = vadd.f32 %v323, %v324
    %332 = vadd.xlane.f32.xlu0 %v331
    %v333 = vpop.xlane.xlu0 %332
    %v334 = vadd.f32 %v325, %v326
    %335 = vadd.xlane.f32.xlu0 %v334
    %v336 = vpop.xlane.xlu0 %335
    %v337 = vadd.f32 %v327, %v328
    %338 = vadd.xlane.f32.xlu0 %v337
    %v339 = vpop.xlane.xlu0 %338
    %v340 = vadd.f32 %v329, %v330
    %341 = vadd.xlane.f32.xlu0 %v340
    %v342 = vpop.xlane.xlu0 %341
    %v343 = vadd.f32 %v281, %v313
    %v344 = vadd.f32 %v284, %v316
    %v345 = vadd.f32 %v287, %v319
    %v346 = vadd.f32 %v290, %v322
    %v347 = vadd.f32 %v301, %v333
    %v348 = vadd.f32 %v304, %v336
    %v349 = vadd.f32 %v307, %v339
    %v350 = vadd.f32 %v310, %v342
    %v351 = vld [vmem:[%s3] sm:$0xff]
    %v352 = vld [vmem:[%s3 + $0x8] sm:$0xff]
    %v353 = vld [vmem:[%s3 + $0x10] sm:$0xff]
    %v354 = vld [vmem:[%s3 + $0x18] sm:$0xff]
    %v355 = vadd.f32 %v351, %v343
    %v356 = vadd.f32 %v352, %v344
    %v357 = vadd.f32 %v353, %v345
    %v358 = vadd.f32 %v354, %v346
    %vm359 = vcmask 7168
    %360 = vst.msk [vmem:[%s3] sm:$0xff] %vm359, %v355
    %361 = vst.msk [vmem:[%s3 + $0x8] sm:$0xff] %vm359, %v356
    %362 = vst.msk [vmem:[%s3 + $0x10] sm:$0xff] %vm359, %v357
    %363 = vst.msk [vmem:[%s3 + $0x18] sm:$0xff] %vm359, %v358
    %v364 = vld [vmem:[%s4] sm:$0xff]
    %v365 = vld [vmem:[%s4 + $0x8] sm:$0xff]
    %v366 = vld [vmem:[%s4 + $0x10] sm:$0xff]
    %v367 = vld [vmem:[%s4 + $0x18] sm:$0xff]
    %v368 = vadd.f32 %v364, %v347
    %v369 = vadd.f32 %v365, %v348
    %v370 = vadd.f32 %v366, %v349
    %v371 = vadd.f32 %v367, %v350
    %372 = vst.msk [vmem:[%s4] sm:$0xff] %vm359, %v368
    %373 = vst.msk [vmem:[%s4 + $0x8] sm:$0xff] %vm359, %v369
    %374 = vst.msk [vmem:[%s4 + $0x10] sm:$0xff] %vm359, %v370
    %375 = vst.msk [vmem:[%s4 + $0x18] sm:$0xff] %vm359, %v371
    // Predicated region
    $region22: #{tpu_custom_call.1} parent=1 // pred_check
      _
    $region23: #{tpu_custom_call.1} parent=1 // pred_check_branch
      %377 = sbr.rel (0) target = $region25
    $region24: #{tpu_custom_call.1} parent=1 // pred_region
      _
    $region25: #{tpu_custom_call.1} parent=1 // pred_fallthru
      _
    // Predicated region
    $region26: #{tpu_custom_call.1} parent=1 // pred_check
      _
    $region27: #{tpu_custom_call.1} parent=1 // pred_check_branch
      %379 = sbr.rel (0) target = $region29
    $region28: #{tpu_custom_call.1} parent=1 // pred_region
      _
    $region29: #{tpu_custom_call.1} parent=1 // pred_fallthru
      _
    // Predicated region
    $region30: #{tpu_custom_call.1} parent=1 // pred_check
      _
    $region31: #{tpu_custom_call.1} parent=1 // pred_check_branch
      %381 = sbr.rel (0) target = $region33
    $region32: #{tpu_custom_call.1} parent=1 // pred_region
      _
    $region33: #{tpu_custom_call.1} parent=1 // pred_fallthru
      _
    // Predicated region
    $region34: #{tpu_custom_call.1} parent=1 // pred_check
      _
    $region35: #{tpu_custom_call.1} parent=1 // pred_check_branch
      %383 = sbr.rel (0) target = $region37
    $region36: #{tpu_custom_call.1} parent=1 // pred_region
      _
    $region37: #{tpu_custom_call.1} parent=1 // pred_fallthru
      _
    %384 = vsyncpa [#allocation3], 1

// kernel: tpu_custom_call.1
$region0: #{tpu_custom_call.1}
  #allocation0 [shape = 'u32[]', space=smem, size = 0x4, offset = 0x4, fixed_abs, tag = 'smem constant byte address 0x4 - core index']
  #allocation1 [shape = 'u32[144,128]{1,0:T(1,128)}', space=vmem, size = 0x12000, scoped, tag = 'internal scratch']
  %s0 = inlined_call_operand.hbm [shape: f32[2,32,256], index: 0, kind: input, shape index: {}]
  %s1 = inlined_call_operand.vmem [shape: f32[32,32], index: 1, kind: input, shape index: {}]
  %s2 = inlined_call_operand.vmem [shape: f32[32,1], index: 2, kind: input, shape index: {}]
  %s3 = inlined_call_operand.vmem [shape: f32[1,32,1], index: 3, kind: output, shape index: {0}]
  %s4 = inlined_call_operand.vmem [shape: f32[1,32,1], index: 4, kind: output, shape index: {1}]
  %5 = xla_tuple %s3, %s4
  %s6 = sld [smem:[#allocation0]]
  $region38: #{tpu_custom_call.1} parent=0
    _
  %s8 = ssub.s32 1, %s6
  %s9 = scalar_select 0, %s8, %s6
  $region1: #{tpu_custom_call.1} parent=0
    #allocation2 [shape = 'u8[65536]{0}', space=vmem, size = 0x10000, scoped, tag = 'input window, operand 0, single buffered']
    #allocation3 [shape = 's32[1]{0}', space=sflag, size = 0x4, scoped, tag = 'scoped memory for tpu_custom_call.1']
    %10 = vsyncpa [#allocation3], 0
    // Predicated region
    $region2: #{tpu_custom_call.1} parent=1 // pred_check
      _
    $region3: #{tpu_custom_call.1} parent=1 // pred_check_branch
      %12 = sbr.rel (0) target = $region5
    $region4: #{tpu_custom_call.1} parent=1 // pred_region
      %s14 = ssub.s32 2048, 2048
      %15 = vsyncadd [#allocation3], %s14
      %s16 = sshll.u32 [#allocation2], 4
      %s17 = int_to_ptr.vmem [resolvable:$true] %s16
      %22 = dma.hbm_to_vmem [thread:$0]  %s0, 2048, %s17, [#allocation3], 256, 256, 16
    $region5: #{tpu_custom_call.1} parent=1 // pred_fallthru
      _
    // Predicated region
    $region6: #{tpu_custom_call.1} parent=1 // pred_check
      _
    $region7: #{tpu_custom_call.1} parent=1 // pred_check_branch
      %24 = sbr.rel (0) target = $region9
    $region8: #{tpu_custom_call.1} parent=1 // pred_region
      _
    $region9: #{tpu_custom_call.1} parent=1 // pred_fallthru
      _
    // Predicated region
    $region10: #{tpu_custom_call.1} parent=1 // pred_check
      _
    $region11: #{tpu_custom_call.1} parent=1 // pred_check_branch
      %26 = sbr.rel (0) target = $region13
    $region12: #{tpu_custom_call.1} parent=1 // pred_region
      _
    $region13: #{tpu_custom_call.1} parent=1 // pred_fallthru
      _
    // Predicated region
    $region14: #{tpu_custom_call.1} parent=1 // pred_check
      _
    $region15: #{tpu_custom_call.1} parent=1 // pred_check_branch
      %28 = sbr.rel (0) target = $region17
    $region16: #{tpu_custom_call.1} parent=1 // pred_region
      %29 = dma.done [#allocation3], 2048
    $region17: #{tpu_custom_call.1} parent=1 // pred_fallthru
      _
    %p30 = scmp.eq.s32.totalorder 0, 0
    // Predicated region
    $region18: #{tpu_custom_call.1} parent=1 // pred_check
      %p31 = pneg %p30
    $region19: #{tpu_custom_call.1} parent=1 // pred_check_branch
      %33 = sbr.rel (%p31) target = $region21
    $region20: #{tpu_custom_call.1} parent=1 // pred_region
      %vm34 = vcmask 7168
      %35 = vst.msk [vmem:[%s3] sm:$0xff] %vm34, 0.0
      %36 = vst.msk [vmem:[%s3 + $0x8] sm:$0xff] %vm34, 0.0
      %37 = vst.msk [vmem:[%s3 + $0x10] sm:$0xff] %vm34, 0.0
      %38 = vst.msk [vmem:[%s3 + $0x18] sm:$0xff] %vm34, 0.0
      %39 = vst.msk [vmem:[%s4] sm:$0xff] %vm34, 0.0
      %40 = vst.msk [vmem:[%s4 + $0x8] sm:$0xff] %vm34, 0.0
      %41 = vst.msk [vmem:[%s4 + $0x10] sm:$0xff] %vm34, 0.0
      %42 = vst.msk [vmem:[%s4 + $0x18] sm:$0xff] %vm34, 0.0
    $region21: #{tpu_custom_call.1} parent=1 // pred_fallthru
      _
    %v43 = vld [vmem:[%s1] sm:$0xff]
    %v44 = vld [vmem:[%s1 + $0x8] sm:$0xff]
    %v45 = vld [vmem:[%s1 + $0x10] sm:$0xff]
    %v46 = vld [vmem:[%s1 + $0x18] sm:$0xff]
    %v47 = vld [vmem:[%s2] sm:$0xff]
    %v48 = vld [vmem:[%s2 + $0x8] sm:$0xff]
    %v49 = vld [vmem:[%s2 + $0x10] sm:$0xff]
    %v50 = vld [vmem:[%s2 + $0x18] sm:$0xff]
    %v51 = vld [vmem:[#allocation2] sm:$0xff]
    %v52 = vld [vmem:[#allocation2 + $0x8] sm:$0xff]
    %v53 = vld [vmem:[#allocation2 + $0x10] sm:$0xff]
    %v54 = vld [vmem:[#allocation2 + $0x18] sm:$0xff]
    %v55 = vld [vmem:[#allocation2 + $0x20] sm:$0xff]
    %v56 = vld [vmem:[#allocation2 + $0x28] sm:$0xff]
    %v57 = vld [vmem:[#allocation2 + $0x30] sm:$0xff]
    %v58 = vld [vmem:[#allocation2 + $0x38] sm:$0xff]
    %60 = vset.pattern.permute.xlu0 0
    %61 = vperm.xlu0 %60, %v47
    %v62 = vpop.permute.xlu0 %61
    %65 = vset.pattern.permute.xlu0 0
    %66 = vperm.xlu0 %65, %v48
    %v67 = vpop.permute.xlu0 %66
    %70 = vset.pattern.permute.xlu0 0
    %71 = vperm.xlu0 %70, %v49
    %v72 = vpop.permute.xlu0 %71
    %75 = vset.pattern.permute.xlu0 0
    %76 = vperm.xlu0 %75, %v50
    %v77 = vpop.permute.xlu0 %76
    %vm79 = vcmask 261120
    %v81 = vsel %vm79, %v43, 0
    %v84 = vsel %vm79, %v44, 0
    %v87 = vsel %vm79, %v45, 0
    %v90 = vsel %vm79, %v46, 0
    %92 = vmatprep.subr.mxu0 %v52
    %93 = vmatpush1.msra.mxu0 %v51
    %94 = vmatprep.subr.mxu0 %v54
    %95 = vmatpush1.msra.mxu0 %v53
    %96 = vmatprep.subr.mxu0 %v56
    %97 = vmatpush1.msra.mxu0 %v55
    %98 = vmatprep.subr.mxu0 %v58
    %99 = vmatpush1.msra.mxu0 %v57
    %100 = vmatprep.subr.mxu0 0.0
    %101 = vmatpush1.msra.mxu0 0.0
    %102 = vmatprep.subr.mxu0 0.0
    %103 = vmatpush1.msra.mxu0 0.0
    %104 = vmatprep.subr.mxu0 0.0
    %105 = vmatpush1.msra.mxu0 0.0
    %106 = vmatprep.subr.mxu0 0.0
    %107 = vmatpush1.msra.mxu0 0.0
    %108 = vmatprep.subr.mxu0 0.0
    %109 = vmatpush1.msra.mxu0 0.0
    %110 = vmatprep.subr.mxu0 0.0
    %111 = vmatpush1.msra.mxu0 0.0
    %112 = vmatprep.subr.mxu0 0.0
    %113 = vmatpush1.msra.mxu0 0.0
    %114 = vmatprep.subr.mxu0 0.0
    %115 = vmatpush1.msra.mxu0 0.0
    %116 = vmatprep.subr.mxu0 0.0
    %117 = vmatpush1.msra.mxu0 0.0
    %118 = vmatprep.subr.mxu0 0.0
    %119 = vmatpush1.msra.mxu0 0.0
    %120 = vmatprep.subr.mxu0 0.0
    %121 = vmatpush1.msra.mxu0 0.0
    %122 = vmatprep.subr.mxu0 0.0
    %123 = vmatpush1.msra.mxu0 0.0
    %124 = vmatprep.subr.mxu0 0.0
    %125 = vmatpush1.msra.mxu0 0.0
    %126 = vmatprep.subr.mxu0 0.0
    %127 = vmatpush1.msra.mxu0 0.0
    %128 = vmatprep.subr.mxu0 0.0
    %129 = vmatpush1.msra.mxu0 0.0
    %130 = vmatprep.subr.mxu0 0.0
    %131 = vmatpush1.msra.mxu0 0.0
    %132 = vmatprep.subr.mxu0 0.0
    %133 = vmatpush1.msra.mxu0 0.0
    %134 = vmatprep.subr.mxu0 0.0
    %135 = vmatpush1.msra.mxu0 0.0
    %136 = vmatprep.subr.mxu0 0.0
    %137 = vmatpush1.msra.mxu0 0.0
    %138 = vmatprep.subr.mxu0 0.0
    %139 = vmatpush1.msra.mxu0 0.0
    %140 = vmatprep.subr.mxu0 0.0
    %141 = vmatpush1.msra.mxu0 0.0
    %142 = vmatprep.subr.mxu0 0.0
    %143 = vmatpush1.msra.mxu0 0.0
    %144 = vmatprep.subr.mxu0 0.0
    %145 = vmatpush1.msra.mxu0 0.0
    %146 = vmatprep.subr.mxu0 0.0
    %147 = vmatpush1.msra.mxu0 0.0
    %148 = vmatprep.subr.mxu0 0.0
    %149 = vmatpush1.msra.mxu0 0.0
    %150 = vmatprep.subr.mxu0 0.0
    %151 = vmatpush1.msra.mxu0 0.0
    %152 = vmatprep.subr.mxu0 0.0
    %153 = vmatpush1.msra.mxu0 0.0
    %154 = vmatprep.subr.mxu0 0.0
    %155 = vmatpush1.msra.mxu0 0.0
    %156 = vmatprep.mubr.f32.mxu0 0.0
    %157 = vmatmul.mubr.f32.gmra.mrb[0].mxu0 %v81
    %v158 = vpop.f32.mrb[0].mxu0
    %v159 = vadd.f32 %v62, %v158
    %v160 = vpop.f32.mrb[0].mxu0
    %v161 = vadd.f32 %v62, %v160
    %162 = vmatprep.mubr.f32.mxu0 0.0
    %163 = vmatmul.mubr.f32.gmra.mrb[0].mxu0 %v84
    %v164 = vpop.f32.mrb[0].mxu0
    %v165 = vadd.f32 %v67, %v164
    %v166 = vpop.f32.mrb[0].mxu0
    %v167 = vadd.f32 %v67, %v166
    %168 = vmatprep.mubr.f32.mxu0 0.0
    %169 = vmatmul.mubr.f32.gmra.mrb[0].mxu0 %v87
    %v170 = vpop.f32.mrb[0].mxu0
    %v171 = vadd.f32 %v72, %v170
    %v172 = vpop.f32.mrb[0].mxu0
    %v173 = vadd.f32 %v72, %v172
    %174 = vmatprep.mubr.f32.mxu0 0.0
    %175 = vmatmul.mubr.f32.gmra.mrb[0].mxu0 %v90
    %v176 = vpop.f32.mrb[0].mxu0
    %v177 = vadd.f32 %v77, %v176
    %v178 = vpop.f32.mrb[0].mxu0
    %v179 = vadd.f32 %v77, %v178
    %180 = vdwg.mxu0
    %s181 = scalar_lea.vmem [#allocation2], 64
    %v182 = vld [vmem:[%s181] sm:$0xff]
    %v183 = vld [vmem:[%s181 + $0x8] sm:$0xff]
    %v184 = vld [vmem:[%s181 + $0x10] sm:$0xff]
    %v185 = vld [vmem:[%s181 + $0x18] sm:$0xff]
    %v186 = vld [vmem:[%s181 + $0x20] sm:$0xff]
    %v187 = vld [vmem:[%s181 + $0x28] sm:$0xff]
    %v188 = vld [vmem:[%s181 + $0x30] sm:$0xff]
    %v189 = vld [vmem:[%s181 + $0x38] sm:$0xff]
    %190 = vmatprep.subr.mxu0 %v183
    %191 = vmatpush1.msra.mxu0 %v182
    %192 = vmatprep.subr.mxu0 %v185
    %193 = vmatpush1.msra.mxu0 %v184
    %194 = vmatprep.subr.mxu0 %v187
    %195 = vmatpush1.msra.mxu0 %v186
    %196 = vmatprep.subr.mxu0 %v189
    %197 = vmatpush1.msra.mxu0 %v188
    %198 = vmatprep.subr.mxu0 0.0
    %199 = vmatpush1.msra.mxu0 0.0
    %200 = vmatprep.subr.mxu0 0.0
    %201 = vmatpush1.msra.mxu0 0.0
    %202 = vmatprep.subr.mxu0 0.0
    %203 = vmatpush1.msra.mxu0 0.0
    %204 = vmatprep.subr.mxu0 0.0
    %205 = vmatpush1.msra.mxu0 0.0
    %206 = vmatprep.subr.mxu0 0.0
    %207 = vmatpush1.msra.mxu0 0.0
    %208 = vmatprep.subr.mxu0 0.0
    %209 = vmatpush1.msra.mxu0 0.0
    %210 = vmatprep.subr.mxu0 0.0
    %211 = vmatpush1.msra.mxu0 0.0
    %212 = vmatprep.subr.mxu0 0.0
    %213 = vmatpush1.msra.mxu0 0.0
    %214 = vmatprep.subr.mxu0 0.0
    %215 = vmatpush1.msra.mxu0 0.0
    %216 = vmatprep.subr.mxu0 0.0
    %217 = vmatpush1.msra.mxu0 0.0
    %218 = vmatprep.subr.mxu0 0.0
    %219 = vmatpush1.msra.mxu0 0.0
    %220 = vmatprep.subr.mxu0 0.0
    %221 = vmatpush1.msra.mxu0 0.0
    %222 = vmatprep.subr.mxu0 0.0
    %223 = vmatpush1.msra.mxu0 0.0
    %224 = vmatprep.subr.mxu0 0.0
    %225 = vmatpush1.msra.mxu0 0.0
    %226 = vmatprep.subr.mxu0 0.0
    %227 = vmatpush1.msra.mxu0 0.0
    %228 = vmatprep.subr.mxu0 0.0
    %229 = vmatpush1.msra.mxu0 0.0
    %230 = vmatprep.subr.mxu0 0.0
    %231 = vmatpush1.msra.mxu0 0.0
    %232 = vmatprep.subr.mxu0 0.0
    %233 = vmatpush1.msra.mxu0 0.0
    %234 = vmatprep.subr.mxu0 0.0
    %235 = vmatpush1.msra.mxu0 0.0
    %236 = vmatprep.subr.mxu0 0.0
    %237 = vmatpush1.msra.mxu0 0.0
    %238 = vmatprep.subr.mxu0 0.0
    %239 = vmatpush1.msra.mxu0 0.0
    %240 = vmatprep.subr.mxu0 0.0
    %241 = vmatpush1.msra.mxu0 0.0
    %242 = vmatprep.subr.mxu0 0.0
    %243 = vmatpush1.msra.mxu0 0.0
    %244 = vmatprep.subr.mxu0 0.0
    %245 = vmatpush1.msra.mxu0 0.0
    %246 = vmatprep.subr.mxu0 0.0
    %247 = vmatpush1.msra.mxu0 0.0
    %248 = vmatprep.subr.mxu0 0.0
    %249 = vmatpush1.msra.mxu0 0.0
    %250 = vmatprep.subr.mxu0 0.0
    %251 = vmatpush1.msra.mxu0 0.0
    %252 = vmatprep.subr.mxu0 0.0
    %253 = vmatpush1.msra.mxu0 0.0
    %254 = vmatprep.mubr.f32.mxu0 0.0
    %255 = vmatmul.mubr.f32.gmra.mrb[0].mxu0 %v81
    %v256 = vpop.f32.mrb[0].mxu0
    %v257 = vadd.f32 %v62, %v256
    %v258 = vpop.f32.mrb[0].mxu0
    %v259 = vadd.f32 %v62, %v258
    %260 = vmatprep.mubr.f32.mxu0 0.0
    %261 = vmatmul.mubr.f32.gmra.mrb[0].mxu0 %v84
    %v262 = vpop.f32.mrb[0].mxu0
    %v263 = vadd.f32 %v67, %v262
    %v264 = vpop.f32.mrb[0].mxu0
    %v265 = vadd.f32 %v67, %v264
    %266 = vmatprep.mubr.f32.mxu0 0.0
    %267 = vmatmul.mubr.f32.gmra.mrb[0].mxu0 %v87
    %v268 = vpop.f32.mrb[0].mxu0
    %v269 = vadd.f32 %v72, %v268
    %v270 = vpop.f32.mrb[0].mxu0
    %v271 = vadd.f32 %v72, %v270
    %272 = vmatprep.mubr.f32.mxu0 0.0
    %273 = vmatmul.mubr.f32.gmra.mrb[0].mxu0 %v90
    %v274 = vpop.f32.mrb[0].mxu0
    %v275 = vadd.f32 %v77, %v274
    %v276 = vpop.f32.mrb[0].mxu0
    %v277 = vadd.f32 %v77, %v276
    %278 = vdwg.mxu0
    %v279 = vadd.f32 %v159, %v161
    %280 = vadd.xlane.f32.xlu0 %v279
    %v281 = vpop.xlane.xlu0 %280
    %v282 = vadd.f32 %v165, %v167
    %283 = vadd.xlane.f32.xlu0 %v282
    %v284 = vpop.xlane.xlu0 %283
    %v285 = vadd.f32 %v171, %v173
    %286 = vadd.xlane.f32.xlu0 %v285
    %v287 = vpop.xlane.xlu0 %286
    %v288 = vadd.f32 %v177, %v179
    %289 = vadd.xlane.f32.xlu0 %v288
    %v290 = vpop.xlane.xlu0 %289
    %v291 = vmul.f32 %v159, %v159
    %v292 = vmul.f32 %v161, %v161
    %v293 = vmul.f32 %v165, %v165
    %v294 = vmul.f32 %v167, %v167
    %v295 = vmul.f32 %v171, %v171
    %v296 = vmul.f32 %v173, %v173
    %v297 = vmul.f32 %v177, %v177
    %v298 = vmul.f32 %v179, %v179
    %v299 = vadd.f32 %v291, %v292
    %300 = vadd.xlane.f32.xlu0 %v299
    %v301 = vpop.xlane.xlu0 %300
    %v302 = vadd.f32 %v293, %v294
    %303 = vadd.xlane.f32.xlu0 %v302
    %v304 = vpop.xlane.xlu0 %303
    %v305 = vadd.f32 %v295, %v296
    %306 = vadd.xlane.f32.xlu0 %v305
    %v307 = vpop.xlane.xlu0 %306
    %v308 = vadd.f32 %v297, %v298
    %309 = vadd.xlane.f32.xlu0 %v308
    %v310 = vpop.xlane.xlu0 %309
    %v311 = vadd.f32 %v257, %v259
    %312 = vadd.xlane.f32.xlu0 %v311
    %v313 = vpop.xlane.xlu0 %312
    %v314 = vadd.f32 %v263, %v265
    %315 = vadd.xlane.f32.xlu0 %v314
    %v316 = vpop.xlane.xlu0 %315
    %v317 = vadd.f32 %v269, %v271
    %318 = vadd.xlane.f32.xlu0 %v317
    %v319 = vpop.xlane.xlu0 %318
    %v320 = vadd.f32 %v275, %v277
    %321 = vadd.xlane.f32.xlu0 %v320
    %v322 = vpop.xlane.xlu0 %321
    %v323 = vmul.f32 %v257, %v257
    %v324 = vmul.f32 %v259, %v259
    %v325 = vmul.f32 %v263, %v263
    %v326 = vmul.f32 %v265, %v265
    %v327 = vmul.f32 %v269, %v269
    %v328 = vmul.f32 %v271, %v271
    %v329 = vmul.f32 %v275, %v275
    %v330 = vmul.f32 %v277, %v277
    %v331 = vadd.f32 %v323, %v324
    %332 = vadd.xlane.f32.xlu0 %v331
    %v333 = vpop.xlane.xlu0 %332
    %v334 = vadd.f32 %v325, %v326
    %335 = vadd.xlane.f32.xlu0 %v334
    %v336 = vpop.xlane.xlu0 %335
    %v337 = vadd.f32 %v327, %v328
    %338 = vadd.xlane.f32.xlu0 %v337
    %v339 = vpop.xlane.xlu0 %338
    %v340 = vadd.f32 %v329, %v330
    %341 = vadd.xlane.f32.xlu0 %v340
    %v342 = vpop.xlane.xlu0 %341
    %v343 = vadd.f32 %v281, %v313
    %v344 = vadd.f32 %v284, %v316
    %v345 = vadd.f32 %v287, %v319
    %v346 = vadd.f32 %v290, %v322
    %v347 = vadd.f32 %v301, %v333
    %v348 = vadd.f32 %v304, %v336
    %v349 = vadd.f32 %v307, %v339
    %v350 = vadd.f32 %v310, %v342
    %v351 = vld [vmem:[%s3] sm:$0xff]
    %v352 = vld [vmem:[%s3 + $0x8] sm:$0xff]
    %v353 = vld [vmem:[%s3 + $0x10] sm:$0xff]
    %v354 = vld [vmem:[%s3 + $0x18] sm:$0xff]
    %v355 = vadd.f32 %v351, %v343
    %v356 = vadd.f32 %v352, %v344
    %v357 = vadd.f32 %v353, %v345
    %v358 = vadd.f32 %v354, %v346
    %vm359 = vcmask 7168
    %360 = vst.msk [vmem:[%s3] sm:$0xff] %vm359, %v355
    %361 = vst.msk [vmem:[%s3 + $0x8] sm:$0xff] %vm359, %v356
    %362 = vst.msk [vmem:[%s3 + $0x10] sm:$0xff] %vm359, %v357
    %363 = vst.msk [vmem:[%s3 + $0x18] sm:$0xff] %vm359, %v358
    %v364 = vld [vmem:[%s4] sm:$0xff]
    %v365 = vld [vmem:[%s4 + $0x8] sm:$0xff]
    %v366 = vld [vmem:[%s4 + $0x10] sm:$0xff]
    %v367 = vld [vmem:[%s4 + $0x18] sm:$0xff]
    %v368 = vadd.f32 %v364, %v347
    %v369 = vadd.f32 %v365, %v348
    %v370 = vadd.f32 %v366, %v349
    %v371 = vadd.f32 %v367, %v350
    %372 = vst.msk [vmem:[%s4] sm:$0xff] %vm359, %v368
    %373 = vst.msk [vmem:[%s4 + $0x8] sm:$0xff] %vm359, %v369
    %374 = vst.msk [vmem:[%s4 + $0x10] sm:$0xff] %vm359, %v370
    %375 = vst.msk [vmem:[%s4 + $0x18] sm:$0xff] %vm359, %v371
    // Predicated region
    $region22: #{tpu_custom_call.1} parent=1 // pred_check
      _
    $region23: #{tpu_custom_call.1} parent=1 // pred_check_branch
      %377 = sbr.rel (0) target = $region25
    $region24: #{tpu_custom_call.1} parent=1 // pred_region
      _
    $region25: #{tpu_custom_call.1} parent=1 // pred_fallthru
      _
    // Predicated region
    $region26: #{tpu_custom_call.1} parent=1 // pred_check
      _
    $region27: #{tpu_custom_call.1} parent=1 // pred_check_branch
      %379 = sbr.rel (0) target = $region29
    $region28: #{tpu_custom_call.1} parent=1 // pred_region
      _
    $region29: #{tpu_custom_call.1} parent=1 // pred_fallthru
      _
    // Predicated region
    $region30: #{tpu_custom_call.1} parent=1 // pred_check
      _
    $region31: #{tpu_custom_call.1} parent=1 // pred_check_branch
      %381 = sbr.rel (0) target = $region33
    $region32: #{tpu_custom_call.1} parent=1 // pred_region
      _
    $region33: #{tpu_custom_call.1} parent=1 // pred_fallthru
      _
    // Predicated region
    $region34: #{tpu_custom_call.1} parent=1 // pred_check
      _
    $region35: #{tpu_custom_call.1} parent=1 // pred_check_branch
      %383 = sbr.rel (0) target = $region37
    $region36: #{tpu_custom_call.1} parent=1 // pred_region
      _
    $region37: #{tpu_custom_call.1} parent=1 // pred_fallthru
      _
    %384 = vsyncpa [#allocation3], 1

</llo_original>
